<compile_context>
chip_gen: v6e
topology: v6e:2x2x1
jax: 0.10.0
libtpu: 0.0.40
codegen_flags: <defaults>
</compile_context>

<pallas_src>
import math
from typing import Optional

import jax
import jax.numpy as jnp
from jax import lax
from jax.experimental import pallas as pl
from jax.experimental.pallas import tpu as pltpu


# ---------------------------------------------------------------------------
# Relative-position bucketing (pure-JAX precompute, mirrors the PyTorch code).
# ---------------------------------------------------------------------------
def _relative_position_bucket(relative_position, is_bidirectional, num_buckets, max_distance):
    relative_buckets = jnp.zeros_like(relative_position)
    if is_bidirectional:
        num_buckets //= 2
        relative_buckets = relative_buckets + (relative_position > 0).astype(jnp.int32) * num_buckets
        relative_position = jnp.abs(relative_position)
    else:
        relative_position = -jnp.minimum(relative_position, jnp.zeros_like(relative_position))
    max_exact = num_buckets // 2
    is_small = relative_position < max_exact
    rel_if_large = max_exact + (
        jnp.log(relative_position.astype(jnp.float32) / max_exact)
        / math.log(max_distance / max_exact)
        * (num_buckets - max_exact)
    ).astype(jnp.int32)
    rel_if_large = jnp.minimum(rel_if_large, num_buckets - 1)
    relative_buckets = relative_buckets + jnp.where(is_small, relative_position, rel_if_large)
    return relative_buckets


# ---------------------------------------------------------------------------
# Fused per-(batch, head) cross-attention kernel.
# ---------------------------------------------------------------------------
def _mha_relbias_kernel(dst_ref, src_ref, bias_ref, mask_ref,
                        wq_ref, wk_ref, wv_ref, wo_ref, out_ref):
    h = pl.program_id(1)

    # Output block is resident across the head (reduction) axis; zero at h==0.
    @pl.when(h == 0)
    def _init():
        out_ref[...] = jnp.zeros_like(out_ref)

    dst = dst_ref[0]   # [T_q, C]
    src = src_ref[0]   # [T_k, C]
    wq = wq_ref[0]     # [d_k, C]
    wk = wk_ref[0]     # [d_k, C]
    wv = wv_ref[0]     # [d_k, C]
    wo = wo_ref[0]     # [C, d_k]

    # Contract the last dim of both operands (avoids explicit transposes).
    contract_last = (((1,), (1,)), ((), ()))

    q = lax.dot_general(dst, wq, contract_last, preferred_element_type=jnp.float32)  # [T_q, d_k]
    k = lax.dot_general(src, wk, contract_last, preferred_element_type=jnp.float32)  # [T_k, d_k]
    v = lax.dot_general(src, wv, contract_last, preferred_element_type=jnp.float32)  # [T_k, d_k]

    s = lax.dot_general(q, k, contract_last, preferred_element_type=jnp.float32)     # [T_q, T_k]
    s = s + bias_ref[0]                                   # relative attention bias
    s = jnp.where(mask_ref[0] != 0.0, s, jnp.float32(-1000000000.0))  # masked_fill

    # Numerically-stable softmax over keys.
    m = jnp.max(s, axis=-1, keepdims=True)
    e = jnp.exp(s - m)
    attn = e / jnp.sum(e, axis=-1, keepdims=True)

    o = lax.dot_general(attn, v, (((1,), (0,)), ((), ())),
                        preferred_element_type=jnp.float32)            # [T_q, d_k]
    contrib = lax.dot_general(o, wo, contract_last,
                              preferred_element_type=jnp.float32)      # [T_q, C]

    out_ref[0] = out_ref[0] + contrib


# ---------------------------------------------------------------------------
# Wrapper: full module forward.
# ---------------------------------------------------------------------------
def mha_encdec_relbias(src: jax.Array, dst: jax.Array,
                       wq: jax.Array, wk: jax.Array, wv: jax.Array, wo: jax.Array,
                       rel_emb: jax.Array, *,
                       num_heads: int, is_bidirectional: bool,
                       num_buckets: int = 32, max_distance: int = 128,
                       mask: Optional[jax.Array] = None) -> jax.Array:
    """src: [B, T_k, C], dst: [B, T_q, C], wq/wk/wv/wo: [C, C] (nn.Linear layout),
    rel_emb: [num_heads, num_buckets]. Returns [B, T_q, C]."""
    B, T_k, C = src.shape
    T_q = dst.shape[1]
    H = num_heads
    d_k = C // H

    # ---- relative attention bias [H, T_q, T_k] (tiny precompute in JAX) ----
    rel_pos = jnp.arange(T_k, dtype=jnp.int32)[None, :] - jnp.arange(T_q, dtype=jnp.int32)[:, None]
    rp_bucket = _relative_position_bucket(rel_pos, is_bidirectional, num_buckets, max_distance)
    bias = jnp.take(rel_emb, rp_bucket, axis=1).astype(jnp.float32)    # [H, T_q, T_k]

    # ---- mask as float 1/0, broadcast to [B, T_q, T_k] ----
    if mask is None:
        mask_f = jnp.ones((B, T_q, T_k), jnp.float32)
    else:
        m = mask
        if m.ndim == 4:          # e.g. [B, 1, 1/T_q, T_k] as used with [B,H,T_q,T_k] scores
            m = m[:, 0]
        mask_f = jnp.broadcast_to(m.astype(jnp.float32), (B, T_q, T_k))

    # ---- per-head weight slices (nn.Linear weight is [out, in]) ----
    wq_h = wq.reshape(H, d_k, C).astype(jnp.float32)
    wk_h = wk.reshape(H, d_k, C).astype(jnp.float32)
    wv_h = wv.reshape(H, d_k, C).astype(jnp.float32)
    wo_h = wo.reshape(C, H, d_k).transpose(1, 0, 2).astype(jnp.float32)  # [H, C, d_k]

    out = pl.pallas_call(
        _mha_relbias_kernel,
        out_shape=jax.ShapeDtypeStruct((B, T_q, C), jnp.float32),
        grid_spec=pltpu.PrefetchScalarGridSpec(
            num_scalar_prefetch=0,
            grid=(B, H),                                   # reduction (heads) axis last
            in_specs=[
                pl.BlockSpec((1, T_q, C), lambda b, h: (b, 0, 0)),     # dst
                pl.BlockSpec((1, T_k, C), lambda b, h: (b, 0, 0)),     # src
                pl.BlockSpec((1, T_q, T_k), lambda b, h: (h, 0, 0)),   # rel bias (per head)
                pl.BlockSpec((1, T_q, T_k), lambda b, h: (b, 0, 0)),   # mask (per batch)
                pl.BlockSpec((1, d_k, C), lambda b, h: (h, 0, 0)),     # Wq head slice
                pl.BlockSpec((1, d_k, C), lambda b, h: (h, 0, 0)),     # Wk head slice
                pl.BlockSpec((1, d_k, C), lambda b, h: (h, 0, 0)),     # Wv head slice
                pl.BlockSpec((1, C, d_k), lambda b, h: (h, 0, 0)),     # Wo head slice
            ],
            out_specs=pl.BlockSpec((1, T_q, C), lambda b, h: (b, 0, 0)),
        ),
        compiler_params=pltpu.CompilerParams(
            dimension_semantics=("parallel", "arbitrary")),
    )(dst.astype(jnp.float32), src.astype(jnp.float32), bias, mask_f,
      wq_h, wk_h, wv_h, wo_h)

    return out


# ---------------------------------------------------------------------------
# Pure-JAX reference (mirrors the PyTorch forward 1:1) for correctness check.
# ---------------------------------------------------------------------------
def _reference_forward(src, dst, wq, wk, wv, wo, rel_emb, *, num_heads,
                       is_bidirectional, num_buckets=32, max_distance=128, mask=None):
    B, T_k, C = src.shape
    T_q = dst.shape[1]
    H, d_k = num_heads, C // num_heads
    q = (dst @ wq.T).reshape(B, T_q, H, d_k).transpose(0, 2, 1, 3)
    k = (src @ wk.T).reshape(B, T_k, H, d_k).transpose(0, 2, 1, 3)
    v = (src @ wv.T).reshape(B, T_k, H, d_k).transpose(0, 2, 1, 3)
    s = jnp.einsum('bhqd,bhkd->bhqk', q, k)
    rel_pos = jnp.arange(T_k, dtype=jnp.int32)[None, :] - jnp.arange(T_q, dtype=jnp.int32)[:, None]
    rp_bucket = _relative_position_bucket(rel_pos, is_bidirectional, num_buckets, max_distance)
    s = s + jnp.take(rel_emb, rp_bucket, axis=1)[None]
    if mask is not None:
        s = jnp.where(mask, s, -1000000000.0)
    attn = jax.nn.softmax(s, axis=-1)
    pre = jnp.einsum('bhqk,bhkd->bhqd', attn, v)
    pre = pre.transpose(0, 2, 1, 3).reshape(B, T_q, H * d_k)
    return pre @ wo.T


if __name__ == "__main__":
    B, T_q, T_k = 2, 8, 16
    HIDDEN, NUM_HEADS = 32, 4
    NUM_BUCKETS, MAX_DISTANCE = 32, 128
    IS_BIDIRECTIONAL = True

    key = jax.random.PRNGKey(0)
    ks = jax.random.split(key, 7)
    std = HIDDEN ** (-0.5)
    wq = jax.random.normal(ks[0], (HIDDEN, HIDDEN), jnp.float32) * std
    wk = jax.random.normal(ks[1], (HIDDEN, HIDDEN), jnp.float32) * std
    wv = jax.random.normal(ks[2], (HIDDEN, HIDDEN), jnp.float32) * std
    wo = jax.random.normal(ks[3], (HIDDEN, HIDDEN), jnp.float32) * std
    # kaiming_normal_(linear) on [H, num_buckets] ~ std = 1/sqrt(num_buckets)
    rel_emb = jax.random.normal(ks[4], (NUM_HEADS, NUM_BUCKETS), jnp.float32) * (NUM_BUCKETS ** -0.5)
    src = jax.random.normal(ks[5], (B, T_k, HIDDEN), jnp.float32)
    dst = jax.random.normal(ks[6], (B, T_q, HIDDEN), jnp.float32)

    # --- unmasked path ---
    out = mha_encdec_relbias(src, dst, wq, wk, wv, wo, rel_emb,
                             num_heads=NUM_HEADS, is_bidirectional=IS_BIDIRECTIONAL,
                             num_buckets=NUM_BUCKETS, max_distance=MAX_DISTANCE, mask=None)
    out = jax.block_until_ready(out)
    ref = _reference_forward(src, dst, wq, wk, wv, wo, rel_emb,
                             num_heads=NUM_HEADS, is_bidirectional=IS_BIDIRECTIONAL,
                             num_buckets=NUM_BUCKETS, max_distance=MAX_DISTANCE, mask=None)
    assert out.shape == (B, T_q, HIDDEN) and out.dtype == jnp.float32
    assert bool(jnp.allclose(out, ref, atol=1e-4, rtol=1e-4)), "mismatch (no mask)"

    # --- masked path (key padding mask [B, 1, 1, T_k]) ---
    lengths = jnp.array([T_k, T_k - 5], dtype=jnp.int32)
    key_mask = (jnp.arange(T_k)[None, :] < lengths[:, None])            # [B, T_k]
    mask4 = key_mask[:, None, None, :]                                  # [B, 1, 1, T_k]
    out_m = mha_encdec_relbias(src, dst, wq, wk, wv, wo, rel_emb,
                               num_heads=NUM_HEADS, is_bidirectional=IS_BIDIRECTIONAL,
                               num_buckets=NUM_BUCKETS, max_distance=MAX_DISTANCE, mask=mask4)
    out_m = jax.block_until_ready(out_m)
    ref_m = _reference_forward(src, dst, wq, wk, wv, wo, rel_emb,
                               num_heads=NUM_HEADS, is_bidirectional=IS_BIDIRECTIONAL,
                               num_buckets=NUM_BUCKETS, max_distance=MAX_DISTANCE, mask=mask4)
    assert bool(jnp.allclose(out_m, ref_m, atol=1e-4, rtol=1e-4)), "mismatch (masked)"

    print("KERNEL_OK")
</pallas_src>

<mosaic_0001>
module attributes {stable_mosaic.version = 11 : i64} {
  func.func @_mha_relbias_kernel(%arg0: i32, %arg1: i32, %arg2: memref<1x8x32xf32, #tpu.memory_space<vmem>>, %arg3: memref<1x16x32xf32, #tpu.memory_space<vmem>>, %arg4: memref<1x8x16xf32, #tpu.memory_space<vmem>>, %arg5: memref<1x8x16xf32, #tpu.memory_space<vmem>>, %arg6: memref<1x8x32xf32, #tpu.memory_space<vmem>>, %arg7: memref<1x8x32xf32, #tpu.memory_space<vmem>>, %arg8: memref<1x8x32xf32, #tpu.memory_space<vmem>>, %arg9: memref<1x32x8xf32, #tpu.memory_space<vmem>>, %arg10: memref<1x8x32xf32, #tpu.memory_space<vmem>>) attributes {dimension_semantics = [#tpu.dimension_semantics<parallel>, #tpu.dimension_semantics<arbitrary>], iteration_bounds = array<i64: 2, 4>, scalar_prefetch = 0 : i64, scratch_operands = 0 : i64, tpu.core_type = #tpu.core_type<tc>, window_params = [{transform_indices = @transform_0, window_bounds = array<i64: 1, 8, 32>}, {transform_indices = @transform_1, window_bounds = array<i64: 1, 16, 32>}, {transform_indices = @transform_2, window_bounds = array<i64: 1, 8, 16>}, {transform_indices = @transform_3, window_bounds = array<i64: 1, 8, 16>}, {transform_indices = @transform_4, window_bounds = array<i64: 1, 8, 32>}, {transform_indices = @transform_5, window_bounds = array<i64: 1, 8, 32>}, {transform_indices = @transform_6, window_bounds = array<i64: 1, 8, 32>}, {transform_indices = @transform_7, window_bounds = array<i64: 1, 32, 8>}, {transform_indices = @transform_8, window_bounds = array<i64: 1, 8, 32>}]} {
    %c0_i32 = arith.constant 0 : i32
    %0 = arith.cmpi eq, %arg1, %c0_i32 : i32
    %1 = arith.extui %0 : i1 to i32
    %c0_i32_0 = arith.constant 0 : i32
    %2 = arith.cmpi ne, %1, %c0_i32_0 : i32
    scf.if %2 {
      %cst_39 = arith.constant 0.000000e+00 : f32
      %45 = vector.broadcast %cst_39 : f32 to vector<1x8x32xf32>
      %c0_40 = arith.constant 0 : index
      %c0_41 = arith.constant 0 : index
      %c0_42 = arith.constant 0 : index
      %46 = vector.load %arg10[%c0_40, %c0_41, %c0_42] : memref<1x8x32xf32, #tpu.memory_space<vmem>>, vector<1x8x32xf32>
      tpu.vector_store %arg10[%c0_40, %c0_41, %c0_42], %45 {strides = array<i32>} : memref<1x8x32xf32, #tpu.memory_space<vmem>>, vector<1x8x32xf32>,
    } else {
    }
    %c0 = arith.constant 0 : index
    %c0_1 = arith.constant 0 : index
    %c0_2 = arith.constant 0 : index
    %3 = vector.load %arg2[%c0, %c0_1, %c0_2] : memref<1x8x32xf32, #tpu.memory_space<vmem>>, vector<1x8x32xf32>
    %4 = vector.shape_cast %3 : vector<1x8x32xf32> to vector<8x32xf32>
    %c0_3 = arith.constant 0 : index
    %c0_4 = arith.constant 0 : index
    %c0_5 = arith.constant 0 : index
    %5 = vector.load %arg3[%c0_3, %c0_4, %c0_5] : memref<1x16x32xf32, #tpu.memory_space<vmem>>, vector<1x16x32xf32>
    %6 = vector.shape_cast %5 : vector<1x16x32xf32> to vector<16x32xf32>
    %c0_6 = arith.constant 0 : index
    %c0_7 = arith.constant 0 : index
    %c0_8 = arith.constant 0 : index
    %7 = vector.load %arg6[%c0_6, %c0_7, %c0_8] : memref<1x8x32xf32, #tpu.memory_space<vmem>>, vector<1x8x32xf32>
    %8 = vector.shape_cast %7 : vector<1x8x32xf32> to vector<8x32xf32>
    %c0_9 = arith.constant 0 : index
    %c0_10 = arith.constant 0 : index
    %c0_11 = arith.constant 0 : index
    %9 = vector.load %arg7[%c0_9, %c0_10, %c0_11] : memref<1x8x32xf32, #tpu.memory_space<vmem>>, vector<1x8x32xf32>
    %10 = vector.shape_cast %9 : vector<1x8x32xf32> to vector<8x32xf32>
    %c0_12 = arith.constant 0 : index
    %c0_13 = arith.constant 0 : index
    %c0_14 = arith.constant 0 : index
    %11 = vector.load %arg8[%c0_12, %c0_13, %c0_14] : memref<1x8x32xf32, #tpu.memory_space<vmem>>, vector<1x8x32xf32>
    %12 = vector.shape_cast %11 : vector<1x8x32xf32> to vector<8x32xf32>
    %c0_15 = arith.constant 0 : index
    %c0_16 = arith.constant 0 : index
    %c0_17 = arith.constant 0 : index
    %13 = vector.load %arg9[%c0_15, %c0_16, %c0_17] : memref<1x32x8xf32, #tpu.memory_space<vmem>>, vector<1x32x8xf32>
    %14 = vector.shape_cast %13 : vector<1x32x8xf32> to vector<32x8xf32>
    %cst = arith.constant dense<0.000000e+00> : vector<8x8xf32>
    %15 = tpu.matmul %4, %8, %cst {dimension_numbers = #tpu.dot_dimension_numbers<[1], [1], [0], [0], [0, 0, 1, 0], [], []>} : vector<8x32xf32>, vector<8x32xf32>, vector<8x8xf32> -> vector<8x8xf32>
    %cst_18 = arith.constant dense<0.000000e+00> : vector<16x8xf32>
    %16 = tpu.matmul %6, %10, %cst_18 {dimension_numbers = #tpu.dot_dimension_numbers<[1], [1], [0], [0], [0, 0, 1, 0], [], []>} : vector<16x32xf32>, vector<8x32xf32>, vector<16x8xf32> -> vector<16x8xf32>
    %cst_19 = arith.constant dense<0.000000e+00> : vector<16x8xf32>
    %17 = tpu.matmul %6, %12, %cst_19 {dimension_numbers = #tpu.dot_dimension_numbers<[1], [1], [0], [0], [0, 0, 1, 0], [], []>} : vector<16x32xf32>, vector<8x32xf32>, vector<16x8xf32> -> vector<16x8xf32>
    %cst_20 = arith.constant dense<0.000000e+00> : vector<8x16xf32>
    %18 = tpu.matmul %15, %16, %cst_20 {dimension_numbers = #tpu.dot_dimension_numbers<[1], [1], [0], [0], [0, 0, 1, 0], [], []>} : vector<8x8xf32>, vector<16x8xf32>, vector<8x16xf32> -> vector<8x16xf32>
    %c0_21 = arith.constant 0 : index
    %c0_22 = arith.constant 0 : index
    %c0_23 = arith.constant 0 : index
    %19 = vector.load %arg4[%c0_21, %c0_22, %c0_23] : memref<1x8x16xf32, #tpu.memory_space<vmem>>, vector<1x8x16xf32>
    %20 = vector.shape_cast %19 : vector<1x8x16xf32> to vector<8x16xf32>
    %21 = arith.addf %18, %20 : vector<8x16xf32>
    %c0_24 = arith.constant 0 : index
    %c0_25 = arith.constant 0 : index
    %c0_26 = arith.constant 0 : index
    %22 = vector.load %arg5[%c0_24, %c0_25, %c0_26] : memref<1x8x16xf32, #tpu.memory_space<vmem>>, vector<1x8x16xf32>
    %23 = vector.shape_cast %22 : vector<1x8x16xf32> to vector<8x16xf32>
    %cst_27 = arith.constant 0.000000e+00 : f32
    %24 = vector.broadcast %cst_27 : f32 to vector<8x16xf32>
    %25 = arith.cmpf one, %23, %24 : vector<8x16xf32>
    %cst_28 = arith.constant -1.000000e+09 : f32
    %26 = vector.broadcast %cst_28 : f32 to vector<8x16xf32>
    %27 = arith.select %25, %21, %26 : vector<8x16xi1>, vector<8x16xf32>
    %cst_29 = arith.constant dense<0xFF800000> : vector<8xf32>
    %28 = vector.multi_reduction <maximumf>, %27, %cst_29 [1] : vector<8x16xf32> to vector<8xf32>
    %29 = vector.shape_cast %28 : vector<8xf32> to vector<8x1xf32>
    %30 = vector.broadcast %29 : vector<8x1xf32> to vector<8x16xf32>
    %31 = arith.subf %27, %30 : vector<8x16xf32>
    %32 = math.exp %31 : vector<8x16xf32>
    %cst_30 = arith.constant dense<0.000000e+00> : vector<8xf32>
    %33 = vector.multi_reduction <add>, %32, %cst_30 [1] : vector<8x16xf32> to vector<8xf32>
    %34 = vector.shape_cast %33 : vector<8xf32> to vector<8x1xf32>
    %35 = vector.broadcast %34 : vector<8x1xf32> to vector<8x16xf32>
    %36 = arith.divf %32, %35 : vector<8x16xf32>
    %cst_31 = arith.constant dense<0.000000e+00> : vector<8x8xf32>
    %37 = tpu.matmul %36, %17, %cst_31 {dimension_numbers = #tpu.dot_dimension_numbers<[1], [0], [0], [1], [0, 0, 1, 1], [], []>} : vector<8x16xf32>, vector<16x8xf32>, vector<8x8xf32> -> vector<8x8xf32>
    %cst_32 = arith.constant dense<0.000000e+00> : vector<8x32xf32>
    %38 = tpu.matmul %37, %14, %cst_32 {dimension_numbers = #tpu.dot_dimension_numbers<[1], [1], [0], [0], [0, 0, 1, 0], [], []>} : vector<8x8xf32>, vector<32x8xf32>, vector<8x32xf32> -> vector<8x32xf32>
    %c0_33 = arith.constant 0 : index
    %c0_34 = arith.constant 0 : index
    %c0_35 = arith.constant 0 : index
    %39 = vector.load %arg10[%c0_33, %c0_34, %c0_35] : memref<1x8x32xf32, #tpu.memory_space<vmem>>, vector<1x8x32xf32>
    %40 = vector.shape_cast %39 : vector<1x8x32xf32> to vector<8x32xf32>
    %41 = arith.addf %40, %38 : vector<8x32xf32>
    %c0_36 = arith.constant 0 : index
    %c0_37 = arith.constant 0 : index
    %c0_38 = arith.constant 0 : index
    %42 = vector.load %arg10[%c0_36, %c0_37, %c0_38] : memref<1x8x32xf32, #tpu.memory_space<vmem>>, vector<1x8x32xf32>
    %43 = vector.shape_cast %42 : vector<1x8x32xf32> to vector<8x32xf32>
    %44 = vector.shape_cast %41 : vector<8x32xf32> to vector<1x8x32xf32>
    tpu.vector_store %arg10[%c0_36, %c0_37, %c0_38], %44 {strides = array<i32>} : memref<1x8x32xf32, #tpu.memory_space<vmem>>, vector<1x8x32xf32>,
    return
  }
  func.func @transform_0(%arg0: i32, %arg1: i32) -> (i32, i32, i32) {
    %c0_i32 = arith.constant 0 : i32
    %c0_i32_0 = arith.constant 0 : i32
    %c0_i32_1 = arith.constant 0 : i32
    return %arg0, %c0_i32, %c0_i32_0 : i32, i32, i32
  }
  func.func @transform_1(%arg0: i32, %arg1: i32) -> (i32, i32, i32) {
    %c0_i32 = arith.constant 0 : i32
    %c0_i32_0 = arith.constant 0 : i32
    %c0_i32_1 = arith.constant 0 : i32
    return %arg0, %c0_i32, %c0_i32_0 : i32, i32, i32
  }
  func.func @transform_2(%arg0: i32, %arg1: i32) -> (i32, i32, i32) {
    %c0_i32 = arith.constant 0 : i32
    %c0_i32_0 = arith.constant 0 : i32
    %c0_i32_1 = arith.constant 0 : i32
    return %arg1, %c0_i32, %c0_i32_0 : i32, i32, i32
  }
  func.func @transform_3(%arg0: i32, %arg1: i32) -> (i32, i32, i32) {
    %c0_i32 = arith.constant 0 : i32
    %c0_i32_0 = arith.constant 0 : i32
    %c0_i32_1 = arith.constant 0 : i32
    return %arg0, %c0_i32, %c0_i32_0 : i32, i32, i32
  }
  func.func @transform_4(%arg0: i32, %arg1: i32) -> (i32, i32, i32) {
    %c0_i32 = arith.constant 0 : i32
    %c0_i32_0 = arith.constant 0 : i32
    %c0_i32_1 = arith.constant 0 : i32
    return %arg1, %c0_i32, %c0_i32_0 : i32, i32, i32
  }
  func.func @transform_5(%arg0: i32, %arg1: i32) -> (i32, i32, i32) {
    %c0_i32 = arith.constant 0 : i32
    %c0_i32_0 = arith.constant 0 : i32
    %c0_i32_1 = arith.constant 0 : i32
    return %arg1, %c0_i32, %c0_i32_0 : i32, i32, i32
  }
  func.func @transform_6(%arg0: i32, %arg1: i32) -> (i32, i32, i32) {
    %c0_i32 = arith.constant 0 : i32
    %c0_i32_0 = arith.constant 0 : i32
    %c0_i32_1 = arith.constant 0 : i32
    return %arg1, %c0_i32, %c0_i32_0 : i32, i32, i32
  }
  func.func @transform_7(%arg0: i32, %arg1: i32) -> (i32, i32, i32) {
    %c0_i32 = arith.constant 0 : i32
    %c0_i32_0 = arith.constant 0 : i32
    %c0_i32_1 = arith.constant 0 : i32
    return %arg1, %c0_i32, %c0_i32_0 : i32, i32, i32
  }
  func.func @transform_8(%arg0: i32, %arg1: i32) -> (i32, i32, i32) {
    %c0_i32 = arith.constant 0 : i32
    %c0_i32_0 = arith.constant 0 : i32
    %c0_i32_1 = arith.constant 0 : i32
    return %arg0, %c0_i32, %c0_i32_0 : i32, i32, i32
  }
}

</mosaic_0001>

<llo_original>
// kernel: tpu_custom_call.1
$region0: #{tpu_custom_call.1}
  #allocation0 [shape = 'u32[]', space=smem, size = 0x4, offset = 0x4, fixed_abs, tag = 'smem constant byte address 0x4 - core index']
  #allocation1 [shape = 'u32[144,128]{1,0:T(1,128)}', space=vmem, size = 0x12000, scoped, tag = 'internal scratch']
  %s0 = inlined_call_operand.hbm [shape: f32[2,8,32], index: 0, kind: input, shape index: {}]
  %s1 = inlined_call_operand.vmem [shape: f32[2,16,32], index: 1, kind: input, shape index: {}]
  %s2 = inlined_call_operand.vmem [shape: f32[4,8,16], index: 2, kind: input, shape index: {}]
  %s3 = inlined_call_operand.hbm [shape: f32[2,8,16], index: 3, kind: input, shape index: {}]
  %s4 = inlined_call_operand.vmem [shape: f32[4,8,32], index: 4, kind: input, shape index: {}]
  %s5 = inlined_call_operand.vmem [shape: f32[4,8,32], index: 5, kind: input, shape index: {}]
  %s6 = inlined_call_operand.vmem [shape: f32[4,8,32], index: 6, kind: input, shape index: {}]
  %s7 = inlined_call_operand.vmem [shape: f32[4,32,8], index: 7, kind: input, shape index: {}]
  %s8 = inlined_call_operand.hbm [shape: f32[2,8,32], index: 8, kind: output, shape index: {}]
  %s9 = sld [smem:[#allocation0]]
  $region77: #{tpu_custom_call.1} parent=0
    _
  %s11 = ssub.s32 1, %s9
  %s12 = scalar_select 0, %s11, %s9
  $region1: #{tpu_custom_call.1} parent=0
    #allocation2 [shape = 'u8[8192]{0}', space=vmem, size = 0x2000, scoped, tag = 'input window, operand 0']
    #allocation3 [shape = 's32[2]{0}', space=sflag, size = 0x8, scoped, tag = 'scoped memory for tpu_custom_call.1']
    #allocation4 [shape = 's32[2]{0}', space=sflag, size = 0x8, scoped, tag = 'scoped memory for tpu_custom_call.1']
    #allocation5 [shape = 'u8[8192]{0}', space=vmem, size = 0x2000, scoped, tag = 'input window, operand 3']
    #allocation6 [shape = 's32[2]{0}', space=sflag, size = 0x8, scoped, tag = 'scoped memory for tpu_custom_call.1']
    #allocation7 [shape = 'u8[8192]{0}', space=vmem, size = 0x2000, scoped, tag = 'output window, operand 0']
    %13 = vsyncpa [#allocation3], 0
    %s14 = scalar_lea.sflag [#allocation3], 1
    %15 = vsyncpa %s14, 0
    %16 = vsyncpa [#allocation6], 0
    %s17 = scalar_lea.sflag [#allocation6], 1
    %18 = vsyncpa %s17, 0
    %19 = vsyncpa [#allocation4], 0
    %s20 = scalar_lea.sflag [#allocation4], 1
    %21 = vsyncpa %s20, 0
    loop: start=0, step=1, limit=10
    $region2: #{tpu_custom_call.1} parent=1 // loop_pre_header
      _
    $region3: #{tpu_custom_call.1} parent=1 // loop_header
      %s23 = sphi 0, %s27
      %p24 = scmp.ge.s32.totalorder %s23, 10
      %s30 = sphi 0, %s42
      %s31 = sphi 0, %s38
      %s32 = sphi 0, %s30
      %s33 = sphi 0, %s31
      %s34 = sphi 0, %s32
      %s35 = sphi 0, %s33
      %s45 = sphi 0, %s47
      %s48 = sphi 0, %s45
      %s49 = sphi 0, %s48
      %s65 = sphi 0, %s49
      %s71 = sphi 0, %s73
      %s74 = sphi 0, %s71
      %s75 = sphi 0, %s74
      %s91 = sphi 0, %s75
      %s97 = sphi 0, %s99
      %s100 = sphi 0, %s97
      %s101 = sphi 0, %s100
      %s117 = sphi 0, %s101
      %s123 = sphi 0, %s125
      %s126 = sphi 0, %s123
      %s127 = sphi 0, %s126
      %s143 = sphi 0, %s127
      %s149 = sphi 0, %s151
      %s152 = sphi 0, %s149
      %s153 = sphi 0, %s152
      %s169 = sphi 0, %s153
      %s175 = sphi 0, %s177
      %s178 = sphi 0, %s175
      %s179 = sphi 0, %s178
      %s195 = sphi 0, %s179
      %s201 = sphi 0, %s203
      %s204 = sphi 0, %s201
      %s205 = sphi 0, %s204
      %s221 = sphi 0, %s205
      %s227 = sphi 0, %s229
      %s230 = sphi 0, %s227
      %s231 = sphi 0, %s230
      %s247 = sphi 0, %s231
      %s253 = sphi 0, %s255
      %s256 = sphi 0, %s253
      %s257 = sphi 0, %s256
      %s273 = sphi 0, %s257
    $region4: #{tpu_custom_call.1} parent=1 // loop_header_branch
      %26 = sbr.rel (%p24) target = $region8
    $region5: #{tpu_custom_call.1} parent=1 // loop_body
      %s28 = ssub.s32 %s23, 1
      %s29 = ssub.s32 %s23, 2
      %s36 = sadd.s32 1, %s31
      %p37 = scmp.ge.s32.totalorder %s36, 4
      %s38 = scalar_select %p37, 0, %s36
      %s39 = sadd.s32 1, %s30
      %s40 = scalar_select %p37, %s39, %s30
      %p41 = scmp.ge.s32.totalorder %s40, 2
      %s42 = scalar_select %p41, 0, %s40
      %s43 = ssub.s32 %s30, %s42
      %p44 = scmp.eq.s32.totalorder %s43, 0
      %s46 = sadd.s32 %s45, 1
      %s47 = scalar_select %p44, %s45, %s46
      %p50 = pneg %p44
      %p51 = scmp.eq.s32.totalorder %s23, 7
      %p52 = por %p50, %p51
      %p53 = scmp.ne.s32.totalorder %s45, %s48
      %p54 = scmp.eq.s32.totalorder %s23, 0
      %p55 = por %p53, %p54
      %p56 = scmp.ne.s32.totalorder %s45, %s48
      %p57 = scmp.eq.s32.totalorder %s28, 7
      %p58 = por %p56, %p57
      %p59 = scmp.ne.s32.totalorder %s48, %s49
      %p60 = scmp.eq.s32.totalorder %s28, 0
      %p61 = por %p59, %p60
      %p62 = scmp.ne.s32.totalorder %s48, %s49
      %p63 = scmp.eq.s32.totalorder %s29, 7
      %p64 = por %p62, %p63
      %p66 = scmp.ne.s32.totalorder %s49, %s65
      %p67 = scmp.eq.s32.totalorder %s29, 0
      %p68 = por %p66, %p67
      %s69 = ssub.s32 %s30, %s42
      %p70 = scmp.eq.s32.totalorder %s69, 0
      %s72 = sadd.s32 %s71, 1
      %s73 = scalar_select %p70, %s71, %s72
      %p76 = pneg %p70
      %p77 = scmp.eq.s32.totalorder %s23, 7
      %p78 = por %p76, %p77
      %p79 = scmp.ne.s32.totalorder %s71, %s74
      %p80 = scmp.eq.s32.totalorder %s23, 0
      %p81 = por %p79, %p80
      %p82 = scmp.ne.s32.totalorder %s71, %s74
      %p83 = scmp.eq.s32.totalorder %s28, 7
      %p84 = por %p82, %p83
      %p85 = scmp.ne.s32.totalorder %s74, %s75
      %p86 = scmp.eq.s32.totalorder %s28, 0
      %p87 = por %p85, %p86
      %p88 = scmp.ne.s32.totalorder %s74, %s75
      %p89 = scmp.eq.s32.totalorder %s29, 7
      %p90 = por %p88, %p89
      %p92 = scmp.ne.s32.totalorder %s75, %s91
      %p93 = scmp.eq.s32.totalorder %s29, 0
      %p94 = por %p92, %p93
      %s95 = ssub.s32 %s31, %s38
      %p96 = scmp.eq.s32.totalorder %s95, 0
      %s98 = sadd.s32 %s97, 1
      %s99 = scalar_select %p96, %s97, %s98
      %p102 = pneg %p96
      %p103 = scmp.eq.s32.totalorder %s23, 7
      %p104 = por %p102, %p103
      %p105 = scmp.ne.s32.totalorder %s97, %s100
      %p106 = scmp.eq.s32.totalorder %s23, 0
      %p107 = por %p105, %p106
      %p108 = scmp.ne.s32.totalorder %s97, %s100
      %p109 = scmp.eq.s32.totalorder %s28, 7
      %p110 = por %p108, %p109
      %p111 = scmp.ne.s32.totalorder %s100, %s101
      %p112 = scmp.eq.s32.totalorder %s28, 0
      %p113 = por %p111, %p112
      %p114 = scmp.ne.s32.totalorder %s100, %s101
      %p115 = scmp.eq.s32.totalorder %s29, 7
      %p116 = por %p114, %p115
      %p118 = scmp.ne.s32.totalorder %s101, %s117
      %p119 = scmp.eq.s32.totalorder %s29, 0
      %p120 = por %p118, %p119
      %s121 = ssub.s32 %s30, %s42
      %p122 = scmp.eq.s32.totalorder %s121, 0
      %s124 = sadd.s32 %s123, 1
      %s125 = scalar_select %p122, %s123, %s124
      %p128 = pneg %p122
      %p129 = scmp.eq.s32.totalorder %s23, 7
      %p130 = por %p128, %p129
      %p131 = scmp.ne.s32.totalorder %s123, %s126
      %p132 = scmp.eq.s32.totalorder %s23, 0
      %p133 = por %p131, %p132
      %p134 = scmp.ne.s32.totalorder %s123, %s126
      %p135 = scmp.eq.s32.totalorder %s28, 7
      %p136 = por %p134, %p135
      %p137 = scmp.ne.s32.totalorder %s126, %s127
      %p138 = scmp.eq.s32.totalorder %s28, 0
      %p139 = por %p137, %p138
      %p140 = scmp.ne.s32.totalorder %s126, %s127
      %p141 = scmp.eq.s32.totalorder %s29, 7
      %p142 = por %p140, %p141
      %p144 = scmp.ne.s32.totalorder %s127, %s143
      %p145 = scmp.eq.s32.totalorder %s29, 0
      %p146 = por %p144, %p145
      %s147 = ssub.s32 %s31, %s38
      %p148 = scmp.eq.s32.totalorder %s147, 0
      %s150 = sadd.s32 %s149, 1
      %s151 = scalar_select %p148, %s149, %s150
      %p154 = pneg %p148
      %p155 = scmp.eq.s32.totalorder %s23, 7
      %p156 = por %p154, %p155
      %p157 = scmp.ne.s32.totalorder %s149, %s152
      %p158 = scmp.eq.s32.totalorder %s23, 0
      %p159 = por %p157, %p158
      %p160 = scmp.ne.s32.totalorder %s149, %s152
      %p161 = scmp.eq.s32.totalorder %s28, 7
      %p162 = por %p160, %p161
      %p163 = scmp.ne.s32.totalorder %s152, %s153
      %p164 = scmp.eq.s32.totalorder %s28, 0
      %p165 = por %p163, %p164
      %p166 = scmp.ne.s32.totalorder %s152, %s153
      %p167 = scmp.eq.s32.totalorder %s29, 7
      %p168 = por %p166, %p167
      %p170 = scmp.ne.s32.totalorder %s153, %s169
      %p171 = scmp.eq.s32.totalorder %s29, 0
      %p172 = por %p170, %p171
      %s173 = ssub.s32 %s31, %s38
      %p174 = scmp.eq.s32.totalorder %s173, 0
      %s176 = sadd.s32 %s175, 1
      %s177 = scalar_select %p174, %s175, %s176
      %p180 = pneg %p174
      %p181 = scmp.eq.s32.totalorder %s23, 7
      %p182 = por %p180, %p181
      %p183 = scmp.ne.s32.totalorder %s175, %s178
      %p184 = scmp.eq.s32.totalorder %s23, 0
      %p185 = por %p183, %p184
      %p186 = scmp.ne.s32.totalorder %s175, %s178
      %p187 = scmp.eq.s32.totalorder %s28, 7
      %p188 = por %p186, %p187
      %p189 = scmp.ne.s32.totalorder %s178, %s179
      %p190 = scmp.eq.s32.totalorder %s28, 0
      %p191 = por %p189, %p190
      %p192 = scmp.ne.s32.totalorder %s178, %s179
      %p193 = scmp.eq.s32.totalorder %s29, 7
      %p194 = por %p192, %p193
      %p196 = scmp.ne.s32.totalorder %s179, %s195
      %p197 = scmp.eq.s32.totalorder %s29, 0
      %p198 = por %p196, %p197
      %s199 = ssub.s32 %s31, %s38
      %p200 = scmp.eq.s32.totalorder %s199, 0
      %s202 = sadd.s32 %s201, 1
      %s203 = scalar_select %p200, %s201, %s202
      %p206 = pneg %p200
      %p207 = scmp.eq.s32.totalorder %s23, 7
      %p208 = por %p206, %p207
      %p209 = scmp.ne.s32.totalorder %s201, %s204
      %p210 = scmp.eq.s32.totalorder %s23, 0
      %p211 = por %p209, %p210
      %p212 = scmp.ne.s32.totalorder %s201, %s204
      %p213 = scmp.eq.s32.totalorder %s28, 7
      %p214 = por %p212, %p213
      %p215 = scmp.ne.s32.totalorder %s204, %s205
      %p216 = scmp.eq.s32.totalorder %s28, 0
      %p217 = por %p215, %p216
      %p218 = scmp.ne.s32.totalorder %s204, %s205
      %p219 = scmp.eq.s32.totalorder %s29, 7
      %p220 = por %p218, %p219
      %p222 = scmp.ne.s32.totalorder %s205, %s221
      %p223 = scmp.eq.s32.totalorder %s29, 0
      %p224 = por %p222, %p223
      %s225 = ssub.s32 %s31, %s38
      %p226 = scmp.eq.s32.totalorder %s225, 0
      %s228 = sadd.s32 %s227, 1
      %s229 = scalar_select %p226, %s227, %s228
      %p232 = pneg %p226
      %p233 = scmp.eq.s32.totalorder %s23, 7
      %p234 = por %p232, %p233
      %p235 = scmp.ne.s32.totalorder %s227, %s230
      %p236 = scmp.eq.s32.totalorder %s23, 0
      %p237 = por %p235, %p236
      %p238 = scmp.ne.s32.totalorder %s227, %s230
      %p239 = scmp.eq.s32.totalorder %s28, 7
      %p240 = por %p238, %p239
      %p241 = scmp.ne.s32.totalorder %s230, %s231
      %p242 = scmp.eq.s32.totalorder %s28, 0
      %p243 = por %p241, %p242
      %p244 = scmp.ne.s32.totalorder %s230, %s231
      %p245 = scmp.eq.s32.totalorder %s29, 7
      %p246 = por %p244, %p245
      %p248 = scmp.ne.s32.totalorder %s231, %s247
      %p249 = scmp.eq.s32.totalorder %s29, 0
      %p250 = por %p248, %p249
      %s251 = ssub.s32 %s30, %s42
      %p252 = scmp.eq.s32.totalorder %s251, 0
      %s254 = sadd.s32 %s253, 1
      %s255 = scalar_select %p252, %s253, %s254
      %p258 = pneg %p252
      %p259 = scmp.eq.s32.totalorder %s23, 7
      %p260 = por %p258, %p259
      %p261 = scmp.ne.s32.totalorder %s253, %s256
      %p262 = scmp.eq.s32.totalorder %s23, 0
      %p263 = por %p261, %p262
      %p264 = scmp.ne.s32.totalorder %s253, %s256
      %p265 = scmp.eq.s32.totalorder %s28, 7
      %p266 = por %p264, %p265
      %p267 = scmp.ne.s32.totalorder %s256, %s257
      %p268 = scmp.eq.s32.totalorder %s28, 0
      %p269 = por %p267, %p268
      %p270 = scmp.ne.s32.totalorder %s256, %s257
      %p271 = scmp.eq.s32.totalorder %s29, 7
      %p272 = por %p270, %p271
      %p274 = scmp.ne.s32.totalorder %s257, %s273
      %p275 = scmp.eq.s32.totalorder %s29, 0
      %p276 = por %p274, %p275
      %p277 = scmp.le.s32.totalorder 1, %s23
      %p278 = scmp.lt.s32.totalorder %s23, 9
      %p279 = pnand %p277, %p278
      %p280 = pneg %p279
      // Predicated region
      $region9: #{tpu_custom_call.1} parent=5 // pred_check
        _
      $region10: #{tpu_custom_call.1} parent=5 // pred_check_branch
        %282 = sbr.rel (%p279) target = $region12
      $region11: #{tpu_custom_call.1} parent=5 // pred_region
        %s283 = ssub.s32 %s23, 1
      $region12: #{tpu_custom_call.1} parent=5 // pred_fallthru
        _
      %p284 = scmp.lt.s32.totalorder %s23, 8
      // Predicated region
      $region13: #{tpu_custom_call.1} parent=5 // pred_check
        %p285 = pneg %p284
      $region14: #{tpu_custom_call.1} parent=5 // pred_check_branch
        %287 = sbr.rel (%p285) target = $region16
      $region15: #{tpu_custom_call.1} parent=5 // pred_region
        // Predicated region
        $region17: #{tpu_custom_call.1} parent=15 // pred_check
          %p288 = pneg %p55
        $region18: #{tpu_custom_call.1} parent=15 // pred_check_branch
          %290 = sbr.rel (%p288) target = $region20
        $region19: #{tpu_custom_call.1} parent=15 // pred_region
          %s291 = sand.u32 %s45, 1
          %s292 = scalar_lea.sflag [#allocation3], %s291
          %s293 = sand.u32 %s45, 1
          %s294 = smul.addr %s293, 8
          %s295 = scalar_lea.vmem [#allocation2], %s294
          %s297 = ssub.s32 128, 128
          %298 = vsyncadd %s292, %s297
          %s299 = smul.addr %s30, 128
          %s300 = scalar_lea.hbm %s0, %s299
          %s302 = sshll.u32 %s295, 4
          %s303 = int_to_ptr.vmem [resolvable:$true] %s302
          %305 = dma.hbm_to_vmem [thread:$0]  %s300, 128, %s303, %s292
        $region20: #{tpu_custom_call.1} parent=15 // pred_fallthru
          _
        // Predicated region
        $region21: #{tpu_custom_call.1} parent=15 // pred_check
          %p306 = pneg %p81
        $region22: #{tpu_custom_call.1} parent=15 // pred_check_branch
          %308 = sbr.rel (%p306) target = $region24
        $region23: #{tpu_custom_call.1} parent=15 // pred_region
          %p309 = scmp.lt.s32.totalorder %s30, 1
          %s310 = scalar_select %p309, %s30, 1
          %s311 = smul.addr %s310, 2
          %s312 = smul.addr %s311, 8
          %s313 = scalar_lea.vmem %s1, %s312
        $region24: #{tpu_custom_call.1} parent=15 // pred_fallthru
          _
        // Predicated region
        $region25: #{tpu_custom_call.1} parent=15 // pred_check
          %p314 = pneg %p107
        $region26: #{tpu_custom_call.1} parent=15 // pred_check_branch
          %316 = sbr.rel (%p314) target = $region28
        $region27: #{tpu_custom_call.1} parent=15 // pred_region
          %p317 = scmp.lt.s32.totalorder %s31, 3
          %s318 = scalar_select %p317, %s31, 3
          %s319 = smul.addr %s318, 8
          %s320 = scalar_lea.vmem %s2, %s319
        $region28: #{tpu_custom_call.1} parent=15 // pred_fallthru
          _
        // Predicated region
        $region29: #{tpu_custom_call.1} parent=15 // pred_check
          %p321 = pneg %p133
        $region30: #{tpu_custom_call.1} parent=15 // pred_check_branch
          %323 = sbr.rel (%p321) target = $region32
        $region31: #{tpu_custom_call.1} parent=15 // pred_region
          %s324 = sand.u32 %s123, 1
          %s325 = scalar_lea.sflag [#allocation6], %s324
          %s326 = sand.u32 %s123, 1
          %s327 = smul.addr %s326, 8
          %s328 = scalar_lea.vmem [#allocation5], %s327
          %s330 = ssub.s32 128, 128
          %331 = vsyncadd %s325, %s330
          %s332 = smul.addr %s30, 128
          %s333 = scalar_lea.hbm %s3, %s332
          %s335 = sshll.u32 %s328, 4
          %s336 = int_to_ptr.vmem [resolvable:$true] %s335
          %338 = dma.hbm_to_vmem [thread:$0]  %s333, 128, %s336, %s325
        $region32: #{tpu_custom_call.1} parent=15 // pred_fallthru
          _
        // Predicated region
        $region33: #{tpu_custom_call.1} parent=15 // pred_check
          %p339 = pneg %p159
        $region34: #{tpu_custom_call.1} parent=15 // pred_check_branch
          %341 = sbr.rel (%p339) target = $region36
        $region35: #{tpu_custom_call.1} parent=15 // pred_region
          %p342 = scmp.lt.s32.totalorder %s31, 3
          %s343 = scalar_select %p342, %s31, 3
          %s344 = smul.addr %s343, 8
          %s345 = scalar_lea.vmem %s4, %s344
        $region36: #{tpu_custom_call.1} parent=15 // pred_fallthru
          _
        // Predicated region
        $region37: #{tpu_custom_call.1} parent=15 // pred_check
          %p346 = pneg %p185
        $region38: #{tpu_custom_call.1} parent=15 // pred_check_branch
          %348 = sbr.rel (%p346) target = $region40
        $region39: #{tpu_custom_call.1} parent=15 // pred_region
          %p349 = scmp.lt.s32.totalorder %s31, 3
          %s350 = scalar_select %p349, %s31, 3
          %s351 = smul.addr %s350, 8
          %s352 = scalar_lea.vmem %s5, %s351
        $region40: #{tpu_custom_call.1} parent=15 // pred_fallthru
          _
        // Predicated region
        $region41: #{tpu_custom_call.1} parent=15 // pred_check
          %p353 = pneg %p211
        $region42: #{tpu_custom_call.1} parent=15 // pred_check_branch
          %355 = sbr.rel (%p353) target = $region44
        $region43: #{tpu_custom_call.1} parent=15 // pred_region
          %p356 = scmp.lt.s32.totalorder %s31, 3
          %s357 = scalar_select %p356, %s31, 3
          %s358 = smul.addr %s357, 8
          %s359 = scalar_lea.vmem %s6, %s358
        $region44: #{tpu_custom_call.1} parent=15 // pred_fallthru
          _
        // Predicated region
        $region45: #{tpu_custom_call.1} parent=15 // pred_check
          %p360 = pneg %p237
        $region46: #{tpu_custom_call.1} parent=15 // pred_check_branch
          %362 = sbr.rel (%p360) target = $region48
        $region47: #{tpu_custom_call.1} parent=15 // pred_region
          %p363 = scmp.lt.s32.totalorder %s31, 3
          %s364 = scalar_select %p363, %s31, 3
          %s365 = smul.addr %s364, 4
          %s366 = smul.addr %s365, 8
          %s367 = scalar_lea.vmem %s7, %s366
        $region48: #{tpu_custom_call.1} parent=15 // pred_fallthru
          _
      $region16: #{tpu_custom_call.1} parent=5 // pred_fallthru
        _
      %p368 = scmp.le.s32.totalorder 1, %s23
      %p369 = scmp.lt.s32.totalorder %s23, 9
      %p370 = pnand %p368, %p369
      %p371 = pneg %p370
      // Predicated region
      $region49: #{tpu_custom_call.1} parent=5 // pred_check
        _
      $region50: #{tpu_custom_call.1} parent=5 // pred_check_branch
        %373 = sbr.rel (%p370) target = $region52
      $region51: #{tpu_custom_call.1} parent=5 // pred_region
        %s374 = ssub.s32 %s23, 1
        %s375 = sand.u32 %s48, 1
        %s376 = scalar_lea.sflag [#allocation3], %s375
        %s377 = sand.u32 %s48, 1
        %s378 = smul.addr %s377, 8
        %s379 = scalar_lea.vmem [#allocation2], %s378
        // Predicated region
        $region53: #{tpu_custom_call.1} parent=51 // pred_check
          %p380 = pneg %p61
        $region54: #{tpu_custom_call.1} parent=51 // pred_check_branch
          %382 = sbr.rel (%p380) target = $region56
        $region55: #{tpu_custom_call.1} parent=51 // pred_region
          %383 = dma.done %s376, 128
        $region56: #{tpu_custom_call.1} parent=51 // pred_fallthru
          _
        %s384 = sand.u32 %s126, 1
        %s385 = scalar_lea.sflag [#allocation6], %s384
        %s386 = sand.u32 %s126, 1
        %s387 = smul.addr %s386, 8
        %s388 = scalar_lea.vmem [#allocation5], %s387
        // Predicated region
        $region57: #{tpu_custom_call.1} parent=51 // pred_check
          %p389 = pneg %p139
        $region58: #{tpu_custom_call.1} parent=51 // pred_check_branch
          %391 = sbr.rel (%p389) target = $region60
        $region59: #{tpu_custom_call.1} parent=51 // pred_region
          %392 = dma.done %s385, 128
        $region60: #{tpu_custom_call.1} parent=51 // pred_fallthru
          _
        %s393 = sand.u32 %s48, 1
        %s394 = scalar_lea.sflag [#allocation3], %s393
        %s395 = sand.u32 %s48, 1
        %s396 = smul.addr %s395, 8
        %s397 = scalar_lea.vmem [#allocation2], %s396
        %p398 = pneg %p61
        %p399 = pneg %p58
        %p400 = scmp.lt.s32.totalorder %s32, 1
        %s401 = scalar_select %p400, %s32, 1
        %s402 = smul.addr %s401, 2
        %s403 = smul.addr %s402, 8
        %s404 = scalar_lea.vmem %s1, %s403
        %p405 = pneg %p87
        %p406 = pneg %p84
        %p407 = scmp.lt.s32.totalorder %s33, 3
        %s408 = scalar_select %p407, %s33, 3
        %s409 = smul.addr %s408, 8
        %s410 = scalar_lea.vmem %s2, %s409
        %p411 = pneg %p113
        %p412 = pneg %p110
        %s413 = sand.u32 %s126, 1
        %s414 = scalar_lea.sflag [#allocation6], %s413
        %s415 = sand.u32 %s126, 1
        %s416 = smul.addr %s415, 8
        %s417 = scalar_lea.vmem [#allocation5], %s416
        %p418 = pneg %p139
        %p419 = pneg %p136
        %p420 = scmp.lt.s32.totalorder %s33, 3
        %s421 = scalar_select %p420, %s33, 3
        %s422 = smul.addr %s421, 8
        %s423 = scalar_lea.vmem %s4, %s422
        %p424 = pneg %p165
        %p425 = pneg %p162
        %p426 = scmp.lt.s32.totalorder %s33, 3
        %s427 = scalar_select %p426, %s33, 3
        %s428 = smul.addr %s427, 8
        %s429 = scalar_lea.vmem %s5, %s428
        %p430 = pneg %p191
        %p431 = pneg %p188
        %p432 = scmp.lt.s32.totalorder %s33, 3
        %s433 = scalar_select %p432, %s33, 3
        %s434 = smul.addr %s433, 8
        %s435 = scalar_lea.vmem %s6, %s434
        %p436 = pneg %p217
        %p437 = pneg %p214
        %p438 = scmp.lt.s32.totalorder %s33, 3
        %s439 = scalar_select %p438, %s33, 3
        %s440 = smul.addr %s439, 4
        %s441 = smul.addr %s440, 8
        %s442 = scalar_lea.vmem %s7, %s441
        %p443 = pneg %p243
        %p444 = pneg %p240
        %p445 = pneg %p269
        %p446 = pneg %p266
        %s447 = sand.u32 %s256, 1
        %s448 = scalar_lea.sflag [#allocation4], %s447
        %s449 = sand.u32 %s256, 1
        %s450 = smul.addr %s449, 8
        %s451 = scalar_lea.vmem [#allocation7], %s450
        %p452 = scmp.lt.s32.totalorder %s32, 1
        %s453 = scalar_select %p452, %s32, 1
        %s454 = smul.addr %s453, 2
        %s455 = smul.addr %s454, 8
        %s456 = scalar_lea.vmem %s1, %s455
        %p457 = scmp.lt.s32.totalorder %s33, 3
        %s458 = scalar_select %p457, %s33, 3
        %s459 = smul.addr %s458, 8
        %s460 = scalar_lea.vmem %s2, %s459
        %p461 = scmp.lt.s32.totalorder %s33, 3
        %s462 = scalar_select %p461, %s33, 3
        %s463 = smul.addr %s462, 8
        %s464 = scalar_lea.vmem %s4, %s463
        %p465 = scmp.lt.s32.totalorder %s33, 3
        %s466 = scalar_select %p465, %s33, 3
        %s467 = smul.addr %s466, 8
        %s468 = scalar_lea.vmem %s5, %s467
        %p469 = scmp.lt.s32.totalorder %s33, 3
        %s470 = scalar_select %p469, %s33, 3
        %s471 = smul.addr %s470, 8
        %s472 = scalar_lea.vmem %s6, %s471
        %p473 = scmp.lt.s32.totalorder %s33, 3
        %s474 = scalar_select %p473, %s33, 3
        %s475 = smul.addr %s474, 4
        %s476 = smul.addr %s475, 8
        %s477 = scalar_lea.vmem %s7, %s476
        %p478 = scmp.eq.s32.totalorder %s33, 0
        // Predicated region
        $region61: #{tpu_custom_call.1} parent=51 // pred_check
          %p479 = pneg %p478
        $region62: #{tpu_custom_call.1} parent=51 // pred_check_branch
          %481 = sbr.rel (%p479) target = $region64
        $region63: #{tpu_custom_call.1} parent=51 // pred_region
          %vm482 = vcmask 261120
          %483 = vst.msk [vmem:[%s451] sm:$0xff] %vm482, 0.0
        $region64: #{tpu_custom_call.1} parent=51 // pred_fallthru
          _
        %v484 = vld [vmem:[%s379] sm:$0xff]
        %v485 = vld [vmem:[%s456] sm:$0xff]
        %v486 = vld [vmem:[%s456 + $0x8] sm:$0xff]
        %v487 = vld [vmem:[%s464] sm:$0xff]
        %v488 = vld [vmem:[%s468] sm:$0xff]
        %v489 = vld [vmem:[%s472] sm:$0xff]
        %v490 = vld [vmem:[%s477] sm:$0xff]
        %v491 = vld [vmem:[%s477 + $0x8] sm:$0xff]
        %v492 = vld [vmem:[%s477 + $0x10] sm:$0xff]
        %v493 = vld [vmem:[%s477 + $0x18] sm:$0xff]
        %vm494 = vcmask 261120
        %v496 = vsel %vm494, %v484, 0
        %v499 = vsel %vm494, %v487, 0
        %501 = vmatprep.subr.mxu0 0.0
        %502 = vmatpush1.xpose.msra.mxu0 0.0
        %503 = vmatprep.subr.mxu0 0.0
        %504 = vmatpush1.xpose.msra.mxu0 0.0
        %505 = vmatprep.subr.mxu0 0.0
        %506 = vmatpush1.xpose.msra.mxu0 0.0
        %507 = vmatprep.subr.mxu0 0.0
        %508 = vmatpush1.xpose.msra.mxu0 0.0
        %509 = vmatprep.subr.mxu0 0.0
        %510 = vmatpush1.xpose.msra.mxu0 0.0
        %511 = vmatprep.subr.mxu0 0.0
        %512 = vmatpush1.xpose.msra.mxu0 0.0
        %513 = vmatprep.subr.mxu0 0.0
        %514 = vmatpush1.xpose.msra.mxu0 0.0
        %515 = vmatprep.subr.mxu0 0.0
        %516 = vmatpush1.xpose.msra.mxu0 0.0
        %517 = vmatprep.subr.mxu0 0.0
        %518 = vmatpush1.xpose.msra.mxu0 0.0
        %519 = vmatprep.subr.mxu0 0.0
        %520 = vmatpush1.xpose.msra.mxu0 0.0
        %521 = vmatprep.subr.mxu0 0.0
        %522 = vmatpush1.xpose.msra.mxu0 0.0
        %523 = vmatprep.subr.mxu0 0.0
        %524 = vmatpush1.xpose.msra.mxu0 0.0
        %525 = vmatprep.subr.mxu0 0.0
        %526 = vmatpush1.xpose.msra.mxu0 0.0
        %527 = vmatprep.subr.mxu0 0.0
        %528 = vmatpush1.xpose.msra.mxu0 0.0
        %529 = vmatprep.subr.mxu0 0.0
        %530 = vmatpush1.xpose.msra.mxu0 0.0
        %531 = vmatprep.subr.mxu0 0.0
        %532 = vmatpush1.xpose.msra.mxu0 %v499
        %533 = vmatprep.subr.mxu0 0.0
        %534 = vmatpush2.xpose.msra.mxu0 0.0
        %535 = vmatprep.subr.mxu0 0.0
        %536 = vmatpush2.xpose.msra.mxu0 0.0
        %537 = vmatprep.subr.mxu0 0.0
        %538 = vmatpush2.xpose.msra.mxu0 0.0
        %539 = vmatprep.subr.mxu0 0.0
        %540 = vmatpush2.xpose.msra.mxu0 0.0
        %541 = vmatprep.subr.mxu0 0.0
        %542 = vmatpush2.xpose.msra.mxu0 0.0
        %543 = vmatprep.subr.mxu0 0.0
        %544 = vmatpush2.xpose.msra.mxu0 0.0
        %545 = vmatprep.subr.mxu0 0.0
        %546 = vmatpush2.xpose.msra.mxu0 0.0
        %547 = vmatprep.subr.mxu0 0.0
        %548 = vmatpush2.xpose.msra.mxu0 0.0
        %549 = vmatprep.subr.mxu0 0.0
        %550 = vmatpush2.xpose.msra.mxu0 0.0
        %551 = vmatprep.subr.mxu0 0.0
        %552 = vmatpush2.xpose.msra.mxu0 0.0
        %553 = vmatprep.subr.mxu0 0.0
        %554 = vmatpush2.xpose.msra.mxu0 0.0
        %555 = vmatprep.subr.mxu0 0.0
        %556 = vmatpush2.xpose.msra.mxu0 0.0
        %557 = vmatprep.subr.mxu0 0.0
        %558 = vmatpush2.xpose.msra.mxu0 0.0
        %559 = vmatprep.subr.mxu0 0.0
        %560 = vmatpush2.xpose.msra.mxu0 0.0
        %561 = vmatprep.subr.mxu0 0.0
        %562 = vmatpush2.xpose.msra.mxu0 0.0
        %563 = vmatprep.subr.mxu0 0.0
        %564 = vmatpush2.xpose.msra.mxu0 0.0
        %565 = vmatprep.mubr.f32.mxu0 0.0
        %566 = vmatmul.mubr.f32.gmra.mxu0 %v496
        %v567 = vpop.f32.mrf.mxu0
        %v568 = vadd.f32 0.0, %v567
        %v569 = vpop.f32.mrf.mxu0
        %570 = vdwg.mxu0
        %v572 = vsel %vm494, %v485, 0
        %v575 = vsel %vm494, %v486, 0
        %v578 = vsel %vm494, %v488, 0
        %580 = vmatprep.subr.mxu0 0.0
        %581 = vmatpush1.xpose.msra.mxu0 0.0
        %582 = vmatprep.subr.mxu0 0.0
        %583 = vmatpush1.xpose.msra.mxu0 0.0
        %584 = vmatprep.subr.mxu0 0.0
        %585 = vmatpush1.xpose.msra.mxu0 0.0
        %586 = vmatprep.subr.mxu0 0.0
        %587 = vmatpush1.xpose.msra.mxu0 0.0
        %588 = vmatprep.subr.mxu0 0.0
        %589 = vmatpush1.xpose.msra.mxu0 0.0
        %590 = vmatprep.subr.mxu0 0.0
        %591 = vmatpush1.xpose.msra.mxu0 0.0
        %592 = vmatprep.subr.mxu0 0.0
        %593 = vmatpush1.xpose.msra.mxu0 0.0
        %594 = vmatprep.subr.mxu0 0.0
        %595 = vmatpush1.xpose.msra.mxu0 0.0
        %596 = vmatprep.subr.mxu0 0.0
        %597 = vmatpush1.xpose.msra.mxu0 0.0
        %598 = vmatprep.subr.mxu0 0.0
        %599 = vmatpush1.xpose.msra.mxu0 0.0
        %600 = vmatprep.subr.mxu0 0.0
        %601 = vmatpush1.xpose.msra.mxu0 0.0
        %602 = vmatprep.subr.mxu0 0.0
        %603 = vmatpush1.xpose.msra.mxu0 0.0
        %604 = vmatprep.subr.mxu0 0.0
        %605 = vmatpush1.xpose.msra.mxu0 0.0
        %606 = vmatprep.subr.mxu0 0.0
        %607 = vmatpush1.xpose.msra.mxu0 0.0
        %608 = vmatprep.subr.mxu0 0.0
        %609 = vmatpush1.xpose.msra.mxu0 0.0
        %610 = vmatprep.subr.mxu0 0.0
        %611 = vmatpush1.xpose.msra.mxu0 %v578
        %612 = vmatprep.subr.mxu0 0.0
        %613 = vmatpush2.xpose.msra.mxu0 0.0
        %614 = vmatprep.subr.mxu0 0.0
        %615 = vmatpush2.xpose.msra.mxu0 0.0
        %616 = vmatprep.subr.mxu0 0.0
        %617 = vmatpush2.xpose.msra.mxu0 0.0
        %618 = vmatprep.subr.mxu0 0.0
        %619 = vmatpush2.xpose.msra.mxu0 0.0
        %620 = vmatprep.subr.mxu0 0.0
        %621 = vmatpush2.xpose.msra.mxu0 0.0
        %622 = vmatprep.subr.mxu0 0.0
        %623 = vmatpush2.xpose.msra.mxu0 0.0
        %624 = vmatprep.subr.mxu0 0.0
        %625 = vmatpush2.xpose.msra.mxu0 0.0
        %626 = vmatprep.subr.mxu0 0.0
        %627 = vmatpush2.xpose.msra.mxu0 0.0
        %628 = vmatprep.subr.mxu0 0.0
        %629 = vmatpush2.xpose.msra.mxu0 0.0
        %630 = vmatprep.subr.mxu0 0.0
        %631 = vmatpush2.xpose.msra.mxu0 0.0
        %632 = vmatprep.subr.mxu0 0.0
        %633 = vmatpush2.xpose.msra.mxu0 0.0
        %634 = vmatprep.subr.mxu0 0.0
        %635 = vmatpush2.xpose.msra.mxu0 0.0
        %636 = vmatprep.subr.mxu0 0.0
        %637 = vmatpush2.xpose.msra.mxu0 0.0
        %638 = vmatprep.subr.mxu0 0.0
        %639 = vmatpush2.xpose.msra.mxu0 0.0
        %640 = vmatprep.subr.mxu0 0.0
        %641 = vmatpush2.xpose.msra.mxu0 0.0
        %642 = vmatprep.subr.mxu0 0.0
        %643 = vmatpush2.xpose.msra.mxu0 0.0
        %644 = vmatprep.mubr.f32.mxu0 0.0
        %645 = vmatmul.mubr.f32.gmra.mxu0 %v572
        %v646 = vpop.f32.mrf.mxu0
        %v647 = vadd.f32 0.0, %v646
        %v648 = vpop.f32.mrf.mxu0
        %649 = vmatprep.mubr.f32.mxu0 0.0
        %650 = vmatmul.mubr.f32.gmra.mxu0 %v575
        %v651 = vpop.f32.mrf.mxu0
        %v652 = vadd.f32 0.0, %v651
        %v653 = vpop.f32.mrf.mxu0
        %654 = vdwg.mxu0
        %v656 = vsel %vm494, %v489, 0
        %658 = vmatprep.subr.mxu0 0.0
        %659 = vmatpush1.xpose.msra.mxu0 0.0
        %660 = vmatprep.subr.mxu0 0.0
        %661 = vmatpush1.xpose.msra.mxu0 0.0
        %662 = vmatprep.subr.mxu0 0.0
        %663 = vmatpush1.xpose.msra.mxu0 0.0
        %664 = vmatprep.subr.mxu0 0.0
        %665 = vmatpush1.xpose.msra.mxu0 0.0
        %666 = vmatprep.subr.mxu0 0.0
        %667 = vmatpush1.xpose.msra.mxu0 0.0
        %668 = vmatprep.subr.mxu0 0.0
        %669 = vmatpush1.xpose.msra.mxu0 0.0
        %670 = vmatprep.subr.mxu0 0.0
        %671 = vmatpush1.xpose.msra.mxu0 0.0
        %672 = vmatprep.subr.mxu0 0.0
        %673 = vmatpush1.xpose.msra.mxu0 0.0
        %674 = vmatprep.subr.mxu0 0.0
        %675 = vmatpush1.xpose.msra.mxu0 0.0
        %676 = vmatprep.subr.mxu0 0.0
        %677 = vmatpush1.xpose.msra.mxu0 0.0
        %678 = vmatprep.subr.mxu0 0.0
        %679 = vmatpush1.xpose.msra.mxu0 0.0
        %680 = vmatprep.subr.mxu0 0.0
        %681 = vmatpush1.xpose.msra.mxu0 0.0
        %682 = vmatprep.subr.mxu0 0.0
        %683 = vmatpush1.xpose.msra.mxu0 0.0
        %684 = vmatprep.subr.mxu0 0.0
        %685 = vmatpush1.xpose.msra.mxu0 0.0
        %686 = vmatprep.subr.mxu0 0.0
        %687 = vmatpush1.xpose.msra.mxu0 0.0
        %688 = vmatprep.subr.mxu0 0.0
        %689 = vmatpush1.xpose.msra.mxu0 %v656
        %690 = vmatprep.subr.mxu0 0.0
        %691 = vmatpush2.xpose.msra.mxu0 0.0
        %692 = vmatprep.subr.mxu0 0.0
        %693 = vmatpush2.xpose.msra.mxu0 0.0
        %694 = vmatprep.subr.mxu0 0.0
        %695 = vmatpush2.xpose.msra.mxu0 0.0
        %696 = vmatprep.subr.mxu0 0.0
        %697 = vmatpush2.xpose.msra.mxu0 0.0
        %698 = vmatprep.subr.mxu0 0.0
        %699 = vmatpush2.xpose.msra.mxu0 0.0
        %700 = vmatprep.subr.mxu0 0.0
        %701 = vmatpush2.xpose.msra.mxu0 0.0
        %702 = vmatprep.subr.mxu0 0.0
        %703 = vmatpush2.xpose.msra.mxu0 0.0
        %704 = vmatprep.subr.mxu0 0.0
        %705 = vmatpush2.xpose.msra.mxu0 0.0
        %706 = vmatprep.subr.mxu0 0.0
        %707 = vmatpush2.xpose.msra.mxu0 0.0
        %708 = vmatprep.subr.mxu0 0.0
        %709 = vmatpush2.xpose.msra.mxu0 0.0
        %710 = vmatprep.subr.mxu0 0.0
        %711 = vmatpush2.xpose.msra.mxu0 0.0
        %712 = vmatprep.subr.mxu0 0.0
        %713 = vmatpush2.xpose.msra.mxu0 0.0
        %714 = vmatprep.subr.mxu0 0.0
        %715 = vmatpush2.xpose.msra.mxu0 0.0
        %716 = vmatprep.subr.mxu0 0.0
        %717 = vmatpush2.xpose.msra.mxu0 0.0
        %718 = vmatprep.subr.mxu0 0.0
        %719 = vmatpush2.xpose.msra.mxu0 0.0
        %720 = vmatprep.subr.mxu0 0.0
        %721 = vmatpush2.xpose.msra.mxu0 0.0
        %722 = vmatprep.mubr.f32.mxu0 0.0
        %723 = vmatmul.mubr.f32.gmra.mxu0 %v572
        %v724 = vpop.f32.mrf.mxu0
        %v725 = vadd.f32 0.0, %v724
        %v726 = vpop.f32.mrf.mxu0
        %727 = vmatprep.mubr.f32.mxu0 0.0
        %728 = vmatmul.mubr.f32.gmra.mxu0 %v575
        %v729 = vpop.f32.mrf.mxu0
        %v730 = vadd.f32 0.0, %v729
        %v731 = vpop.f32.mrf.mxu0
        %732 = vdwg.mxu0
        %v733 = vld [vmem:[%s460] sm:$0xff]
        %vm734 = vcmask 64512
        %v736 = vsel %vm734, %v568, 0
        %v739 = vsel %vm734, %v647, 0
        %v742 = vsel %vm734, %v652, 0
        %744 = vmatprep.subr.mxu0 0.0
        %745 = vmatpush1.xpose.msra.mxu0 0.0
        %746 = vmatprep.subr.mxu0 0.0
        %747 = vmatpush1.xpose.msra.mxu0 0.0
        %748 = vmatprep.subr.mxu0 0.0
        %749 = vmatpush1.xpose.msra.mxu0 0.0
        %750 = vmatprep.subr.mxu0 0.0
        %751 = vmatpush1.xpose.msra.mxu0 0.0
        %752 = vmatprep.subr.mxu0 0.0
        %753 = vmatpush1.xpose.msra.mxu0 0.0
        %754 = vmatprep.subr.mxu0 0.0
        %755 = vmatpush1.xpose.msra.mxu0 0.0
        %756 = vmatprep.subr.mxu0 0.0
        %757 = vmatpush1.xpose.msra.mxu0 0.0
        %758 = vmatprep.subr.mxu0 0.0
        %759 = vmatpush1.xpose.msra.mxu0 0.0
        %760 = vmatprep.subr.mxu0 0.0
        %761 = vmatpush1.xpose.msra.mxu0 0.0
        %762 = vmatprep.subr.mxu0 0.0
        %763 = vmatpush1.xpose.msra.mxu0 0.0
        %764 = vmatprep.subr.mxu0 0.0
        %765 = vmatpush1.xpose.msra.mxu0 0.0
        %766 = vmatprep.subr.mxu0 0.0
        %767 = vmatpush1.xpose.msra.mxu0 0.0
        %768 = vmatprep.subr.mxu0 0.0
        %769 = vmatpush1.xpose.msra.mxu0 0.0
        %770 = vmatprep.subr.mxu0 0.0
        %771 = vmatpush1.xpose.msra.mxu0 0.0
        %772 = vmatprep.subr.mxu0 0.0
        %773 = vmatpush1.xpose.msra.mxu0 %v742
        %774 = vmatprep.subr.mxu0 0.0
        %775 = vmatpush1.xpose.msra.mxu0 %v739
        %776 = vmatprep.subr.mxu0 0.0
        %777 = vmatpush2.xpose.msra.mxu0 0.0
        %778 = vmatprep.subr.mxu0 0.0
        %779 = vmatpush2.xpose.msra.mxu0 0.0
        %780 = vmatprep.subr.mxu0 0.0
        %781 = vmatpush2.xpose.msra.mxu0 0.0
        %782 = vmatprep.subr.mxu0 0.0
        %783 = vmatpush2.xpose.msra.mxu0 0.0
        %784 = vmatprep.subr.mxu0 0.0
        %785 = vmatpush2.xpose.msra.mxu0 0.0
        %786 = vmatprep.subr.mxu0 0.0
        %787 = vmatpush2.xpose.msra.mxu0 0.0
        %788 = vmatprep.subr.mxu0 0.0
        %789 = vmatpush2.xpose.msra.mxu0 0.0
        %790 = vmatprep.subr.mxu0 0.0
        %791 = vmatpush2.xpose.msra.mxu0 0.0
        %792 = vmatprep.subr.mxu0 0.0
        %793 = vmatpush2.xpose.msra.mxu0 0.0
        %794 = vmatprep.subr.mxu0 0.0
        %795 = vmatpush2.xpose.msra.mxu0 0.0
        %796 = vmatprep.subr.mxu0 0.0
        %797 = vmatpush2.xpose.msra.mxu0 0.0
        %798 = vmatprep.subr.mxu0 0.0
        %799 = vmatpush2.xpose.msra.mxu0 0.0
        %800 = vmatprep.subr.mxu0 0.0
        %801 = vmatpush2.xpose.msra.mxu0 0.0
        %802 = vmatprep.subr.mxu0 0.0
        %803 = vmatpush2.xpose.msra.mxu0 0.0
        %804 = vmatprep.subr.mxu0 0.0
        %805 = vmatpush2.xpose.msra.mxu0 0.0
        %806 = vmatprep.subr.mxu0 0.0
        %807 = vmatpush2.xpose.msra.mxu0 0.0
        %808 = vmatprep.mubr.f32.mxu0 0.0
        %809 = vmatmul.mubr.f32.gmra.mxu0 %v736
        %v810 = vpop.f32.mrf.mxu0
        %v811 = vadd.f32 %v733, %v810
        %v812 = vpop.f32.mrf.mxu0
        %813 = vdwg.mxu0
        %v814 = vld [vmem:[%s388] sm:$0xff]
        %vm815 = vcmp.ne.f32.partialorder %v814, 0.0
        %v816 = vsel %vm815, %v811, -1e+09
        %vm817 = vcmask 130048
        %v818 = vsel %vm817, %v816, -inf
        %819 = vmax.xlane.f32.xlu0 %v818
        %v820 = vpop.xlane.xlu0 %819
        %v821 = vsub.f32 %v816, %v820
        %v822 = vmul.f32 %v821, 1.442695
        %v823 = vpow.pop %v822
        %v824 = vsel %vm817, %v823, 0.0
        %825 = vadd.xlane.f32.xlu0 %v824
        %v826 = vpop.xlane.xlu0 %825
        %v827 = vrcp.pop %v826
        %v828 = vmul.f32 %v823, %v827
        %v830 = vsel %vm817, %v828, 0
        %832 = vmatprep.subr.mxu0 0.0
        %833 = vmatpush1.msra.mxu0 0.0
        %834 = vmatprep.subr.mxu0 0.0
        %835 = vmatpush1.msra.mxu0 0.0
        %836 = vmatprep.subr.mxu0 0.0
        %837 = vmatpush1.msra.mxu0 0.0
        %838 = vmatprep.subr.mxu0 0.0
        %839 = vmatpush1.msra.mxu0 0.0
        %840 = vmatprep.subr.mxu0 0.0
        %841 = vmatpush1.msra.mxu0 0.0
        %842 = vmatprep.subr.mxu0 0.0
        %843 = vmatpush1.msra.mxu0 0.0
        %844 = vmatprep.subr.mxu0 0.0
        %845 = vmatpush1.msra.mxu0 0.0
        %846 = vmatprep.subr.mxu0 0.0
        %847 = vmatpush1.msra.mxu0 0.0
        %848 = vmatprep.subr.mxu0 0.0
        %849 = vmatpush1.msra.mxu0 0.0
        %850 = vmatprep.subr.mxu0 0.0
        %851 = vmatpush1.msra.mxu0 0.0
        %852 = vmatprep.subr.mxu0 0.0
        %853 = vmatpush1.msra.mxu0 0.0
        %854 = vmatprep.subr.mxu0 0.0
        %855 = vmatpush1.msra.mxu0 0.0
        %856 = vmatprep.subr.mxu0 0.0
        %857 = vmatpush1.msra.mxu0 0.0
        %858 = vmatprep.subr.mxu0 0.0
        %859 = vmatpush1.msra.mxu0 0.0
        %860 = vmatprep.subr.mxu0 0.0
        %861 = vmatpush1.msra.mxu0 %v730
        %862 = vmatprep.subr.mxu0 0.0
        %863 = vmatpush1.msra.mxu0 %v725
        %864 = vmatprep.subr.mxu0 0.0
        %865 = vmatpush2.msra.mxu0 0.0
        %866 = vmatprep.subr.mxu0 0.0
        %867 = vmatpush2.msra.mxu0 0.0
        %868 = vmatprep.subr.mxu0 0.0
        %869 = vmatpush2.msra.mxu0 0.0
        %870 = vmatprep.subr.mxu0 0.0
        %871 = vmatpush2.msra.mxu0 0.0
        %872 = vmatprep.subr.mxu0 0.0
        %873 = vmatpush2.msra.mxu0 0.0
        %874 = vmatprep.subr.mxu0 0.0
        %875 = vmatpush2.msra.mxu0 0.0
        %876 = vmatprep.subr.mxu0 0.0
        %877 = vmatpush2.msra.mxu0 0.0
        %878 = vmatprep.subr.mxu0 0.0
        %879 = vmatpush2.msra.mxu0 0.0
        %880 = vmatprep.subr.mxu0 0.0
        %881 = vmatpush2.msra.mxu0 0.0
        %882 = vmatprep.subr.mxu0 0.0
        %883 = vmatpush2.msra.mxu0 0.0
        %884 = vmatprep.subr.mxu0 0.0
        %885 = vmatpush2.msra.mxu0 0.0
        %886 = vmatprep.subr.mxu0 0.0
        %887 = vmatpush2.msra.mxu0 0.0
        %888 = vmatprep.subr.mxu0 0.0
        %889 = vmatpush2.msra.mxu0 0.0
        %890 = vmatprep.subr.mxu0 0.0
        %891 = vmatpush2.msra.mxu0 0.0
        %892 = vmatprep.subr.mxu0 0.0
        %893 = vmatpush2.msra.mxu0 0.0
        %894 = vmatprep.subr.mxu0 0.0
        %895 = vmatpush2.msra.mxu0 0.0
        %896 = vmatprep.mubr.f32.mxu0 0.0
        %897 = vmatmul.mubr.f32.gmra.mxu0 %v830
        %v898 = vpop.f32.mrf.mxu0
        %v899 = vadd.f32 0.0, %v898
        %v900 = vpop.f32.mrf.mxu0
        %901 = vdwg.mxu0
        %v903 = vsel %vm734, %v899, 0
        %v906 = vsel %vm734, %v490, 0
        %v909 = vsel %vm734, %v491, 0
        %v912 = vsel %vm734, %v492, 0
        %v915 = vsel %vm734, %v493, 0
        %917 = vmatprep.subr.mxu0 0.0
        %918 = vmatpush1.xpose.msra.mxu0 0.0
        %919 = vmatprep.subr.mxu0 0.0
        %920 = vmatpush1.xpose.msra.mxu0 0.0
        %921 = vmatprep.subr.mxu0 0.0
        %922 = vmatpush1.xpose.msra.mxu0 0.0
        %923 = vmatprep.subr.mxu0 0.0
        %924 = vmatpush1.xpose.msra.mxu0 0.0
        %925 = vmatprep.subr.mxu0 0.0
        %926 = vmatpush1.xpose.msra.mxu0 0.0
        %927 = vmatprep.subr.mxu0 0.0
        %928 = vmatpush1.xpose.msra.mxu0 0.0
        %929 = vmatprep.subr.mxu0 0.0
        %930 = vmatpush1.xpose.msra.mxu0 0.0
        %931 = vmatprep.subr.mxu0 0.0
        %932 = vmatpush1.xpose.msra.mxu0 0.0
        %933 = vmatprep.subr.mxu0 0.0
        %934 = vmatpush1.xpose.msra.mxu0 0.0
        %935 = vmatprep.subr.mxu0 0.0
        %936 = vmatpush1.xpose.msra.mxu0 0.0
        %937 = vmatprep.subr.mxu0 0.0
        %938 = vmatpush1.xpose.msra.mxu0 0.0
        %939 = vmatprep.subr.mxu0 0.0
        %940 = vmatpush1.xpose.msra.mxu0 0.0
        %941 = vmatprep.subr.mxu0 0.0
        %942 = vmatpush1.xpose.msra.mxu0 %v915
        %943 = vmatprep.subr.mxu0 0.0
        %944 = vmatpush1.xpose.msra.mxu0 %v912
        %945 = vmatprep.subr.mxu0 0.0
        %946 = vmatpush1.xpose.msra.mxu0 %v909
        %947 = vmatprep.subr.mxu0 0.0
        %948 = vmatpush1.xpose.msra.mxu0 %v906
        %949 = vmatprep.subr.mxu0 0.0
        %950 = vmatpush2.xpose.msra.mxu0 0.0
        %951 = vmatprep.subr.mxu0 0.0
        %952 = vmatpush2.xpose.msra.mxu0 0.0
        %953 = vmatprep.subr.mxu0 0.0
        %954 = vmatpush2.xpose.msra.mxu0 0.0
        %955 = vmatprep.subr.mxu0 0.0
        %956 = vmatpush2.xpose.msra.mxu0 0.0
        %957 = vmatprep.subr.mxu0 0.0
        %958 = vmatpush2.xpose.msra.mxu0 0.0
        %959 = vmatprep.subr.mxu0 0.0
        %960 = vmatpush2.xpose.msra.mxu0 0.0
        %961 = vmatprep.subr.mxu0 0.0
        %962 = vmatpush2.xpose.msra.mxu0 0.0
        %963 = vmatprep.subr.mxu0 0.0
        %964 = vmatpush2.xpose.msra.mxu0 0.0
        %965 = vmatprep.subr.mxu0 0.0
        %966 = vmatpush2.xpose.msra.mxu0 0.0
        %967 = vmatprep.subr.mxu0 0.0
        %968 = vmatpush2.xpose.msra.mxu0 0.0
        %969 = vmatprep.subr.mxu0 0.0
        %970 = vmatpush2.xpose.msra.mxu0 0.0
        %971 = vmatprep.subr.mxu0 0.0
        %972 = vmatpush2.xpose.msra.mxu0 0.0
        %973 = vmatprep.subr.mxu0 0.0
        %974 = vmatpush2.xpose.msra.mxu0 0.0
        %975 = vmatprep.subr.mxu0 0.0
        %976 = vmatpush2.xpose.msra.mxu0 0.0
        %977 = vmatprep.subr.mxu0 0.0
        %978 = vmatpush2.xpose.msra.mxu0 0.0
        %979 = vmatprep.subr.mxu0 0.0
        %980 = vmatpush2.xpose.msra.mxu0 0.0
        %981 = vmatprep.mubr.f32.mxu0 0.0
        %982 = vmatmul.mubr.f32.gmra.mxu0 %v903
        %v983 = vpop.f32.mrf.mxu0
        %v984 = vadd.f32 0.0, %v983
        %v985 = vpop.f32.mrf.mxu0
        %986 = vdwg.mxu0
        %v987 = vld [vmem:[%s451] sm:$0xff]
        %v988 = vadd.f32 %v987, %v984
        %989 = vst.msk [vmem:[%s451] sm:$0xff] %vm494, %v988
        %s990 = sand.u32 %s256, 1
        %s991 = scalar_lea.sflag [#allocation4], %s990
        %s992 = sand.u32 %s256, 1
        %s993 = smul.addr %s992, 8
        %s994 = scalar_lea.vmem [#allocation7], %s993
        // Predicated region
        $region65: #{tpu_custom_call.1} parent=51 // pred_check
          %p995 = pneg %p266
        $region66: #{tpu_custom_call.1} parent=51 // pred_check_branch
          %997 = sbr.rel (%p995) target = $region68
        $region67: #{tpu_custom_call.1} parent=51 // pred_region
          %s999 = ssub.s32 128, 128
          %1000 = vsyncadd %s991, %s999
          %s1001 = smul.addr %s32, 128
          %s1002 = scalar_lea.hbm %s8, %s1001
          %s1004 = sshll.u32 %s994, 4
          %s1005 = int_to_ptr.vmem [resolvable:$true] %s1004
          %1007 = dma.vmem_to_hbm [thread:$0]  %s1005, 128, %s1002, %s991
        $region68: #{tpu_custom_call.1} parent=51 // pred_fallthru
          _
      $region52: #{tpu_custom_call.1} parent=5 // pred_fallthru
        _
      %p1008 = scmp.le.s32.totalorder 2, %s23
      // Predicated region
      $region69: #{tpu_custom_call.1} parent=5 // pred_check
        %p1009 = pneg %p1008
      $region70: #{tpu_custom_call.1} parent=5 // pred_check_branch
        %1011 = sbr.rel (%p1009) target = $region72
      $region71: #{tpu_custom_call.1} parent=5 // pred_region
        %s1012 = ssub.s32 %s23, 2
        // Predicated region
        $region73: #{tpu_custom_call.1} parent=71 // pred_check
          %p1013 = pneg %p272
        $region74: #{tpu_custom_call.1} parent=71 // pred_check_branch
          %1015 = sbr.rel (%p1013) target = $region76
        $region75: #{tpu_custom_call.1} parent=71 // pred_region
          %s1016 = sand.u32 %s257, 1
          %s1017 = scalar_lea.sflag [#allocation4], %s1016
          %s1018 = sand.u32 %s257, 1
          %s1019 = smul.addr %s1018, 8
          %s1020 = scalar_lea.vmem [#allocation7], %s1019
          %1021 = dma.done %s1017, 128
        $region76: #{tpu_custom_call.1} parent=71 // pred_fallthru
          _
      $region72: #{tpu_custom_call.1} parent=5 // pred_fallthru
        _
    $region6: #{tpu_custom_call.1} parent=1 // loop_footer
      %s27 = sadd.s32 1, %s23
    $region7: #{tpu_custom_call.1} parent=1 // loop_footer_branch
      %22 = sbr.rel target = $region3
    $region8: #{tpu_custom_call.1} parent=1 // loop_exit
      _
    %1022 = vsyncpa [#allocation3], 1
    %s1023 = scalar_lea.sflag [#allocation3], 1
    %1024 = vsyncpa %s1023, 1
    %1025 = vsyncpa [#allocation6], 1
    %s1026 = scalar_lea.sflag [#allocation6], 1
    %1027 = vsyncpa %s1026, 1
    %1028 = vsyncpa [#allocation4], 1
    %s1029 = scalar_lea.sflag [#allocation4], 1
    %1030 = vsyncpa %s1029, 1

</llo_original>
